<compile_context>
chip_gen: v5e
topology: v5e:2x2
jax: 0.10.0
libtpu: 0.0.40
codegen_flags: <defaults>
</compile_context>

<pallas_src>
import math
from functools import partial

import jax
import jax.numpy as jnp
from jax.experimental import pallas as pl
from jax.experimental.pallas import tpu as pltpu

_TARGET_TILE_BYTES = 2 * 1024 * 1024  # 4 tile buffers ~ 8 MiB < v5e 16 MiB scoped


def _drop_path_kernel(u_ref, x_ref, o_ref, *, keep_prob):
    """One grid step = one (Bt, Ct) lane-dense tile.

    u_ref : VMEM (Bt, 1)  per-sample uniform[0,1) randomness, float32
    x_ref : VMEM (Bt, Ct) tile of the flattened input
    o_ref : VMEM (Bt, Ct) tile of the flattened output
    """
    # Per-sample scale in f32 (floor trick), broadcast along lanes on the VPU.
    scale = jnp.floor(keep_prob + u_ref[...]) * (1.0 / keep_prob)  # (Bt, 1) f32
    o_ref[...] = (x_ref[...] * scale).astype(o_ref.dtype)


def _choose_tiles(B, C, itemsize):
    """Pick a lane-dense (Bt, Ct) tile obeying the (8, 128) rule.

    Ct is always a multiple of 128 (or the full dim when C < 128), so stores
    are unmasked on every j-tile except a possible ragged last one.  Tile
    size targets ~2 MiB so pipelining works and VMEM fits on all chips.
    """
    target = _TARGET_TILE_BYTES

    if C < 128:
        # Small trailing dim: take the full dim (always legal) and spend the
        # byte budget on rows.
        Ct = C
        rows = max(1, target // max(1, Ct * itemsize))
        if B <= 8 or rows >= B:
            Bt = B
        else:
            Bt = max(8, min((rows // 8) * 8, (B // 8) * 8))
        return Bt, Ct

    # C >= 128: lane dim is a multiple of 128; ragged last block is handled
    # by the grid (masked stores only there).
    c_aligned = (C // 128) * 128
    Bt = B if B <= 8 else 8
    ct_budget = max(128, (target // max(1, Bt * itemsize)) // 128 * 128)
    Ct = min(c_aligned, ct_budget)

    # If the full (aligned) width fits within the budget and B is large,
    # grow the row count instead so tiles stay near the target size.
    if Ct == c_aligned and B > 8:
        rows = max(8, target // max(1, Ct * itemsize))
        Bt = max(8, min((rows // 8) * 8, (B // 8) * 8))
    return Bt, Ct


def drop_path(x, u, drop_prob: float = 0.0, training: bool = False):
    """Pallas DropPath.  `u` is a (B,) float32 uniform[0,1) tensor supplying
    the per-sample randomness (deterministic given a PRNGKey)."""
    if drop_prob == 0.0 or not training:
        return x
    if drop_prob >= 1.0:
        # keep_prob == 0 would give 0 * inf = NaN; every path is dropped.
        return jnp.zeros_like(x)

    assert u.dtype == jnp.float32, "u must be float32 uniform[0,1)"
    assert u.shape == (x.shape[0],), "u must have shape (batch,)"

    keep_prob = 1.0 - drop_prob
    B = x.shape[0]
    C = math.prod(x.shape[1:])
    itemsize = x.dtype.itemsize

    x2 = x.reshape(B, C)
    u2 = u.reshape(B, 1)

    Bt, Ct = _choose_tiles(B, C, itemsize)
    grid = (pl.cdiv(B, Bt), pl.cdiv(C, Ct))

    out = pl.pallas_call(
        partial(_drop_path_kernel, keep_prob=keep_prob),
        out_shape=jax.ShapeDtypeStruct((B, C), x.dtype),
        grid=grid,
        in_specs=[
            pl.BlockSpec((Bt, 1), lambda i, j: (i, 0)),
            pl.BlockSpec((Bt, Ct), lambda i, j: (i, j)),
        ],
        out_specs=pl.BlockSpec((Bt, Ct), lambda i, j: (i, j)),
        compiler_params=pltpu.CompilerParams(
            dimension_semantics=("parallel", "parallel"),
        ),
        # Let the output reuse x2's HBM buffer when the caller donates x.
        input_output_aliases={1: 0},
        # Accurate bandwidth-dominated cost hint for XLA's scheduler.
        cost_estimate=pl.CostEstimate(
            flops=2 * B * C,
            transcendentals=0,
            bytes_accessed=2 * B * C * itemsize + 4 * B,
        ),
    )(u2, x2)
    return out.reshape(x.shape)


class DropPath:
    """Drop paths (Stochastic Depth) per sample, Pallas-backed."""

    def __init__(self, drop_prob=None):
        self.drop_prob = drop_prob if drop_prob is not None else 0.0
        self.training = True

    def __call__(self, x, key):
        u = jax.random.uniform(key, (x.shape[0],), dtype=jnp.float32)
        return drop_path(x, u, self.drop_prob, self.training)


if __name__ == "__main__":
    key = jax.random.PRNGKey(0)
    kx, ku, kx2, ku2 = jax.random.split(key, 4)

    B, N, D = 2, 8, 32
    drop_prob = 0.3
    keep_prob = 1.0 - drop_prob

    x = jax.random.normal(kx, (B, N, D), dtype=jnp.float32)
    u = jax.random.uniform(ku, (B,), dtype=jnp.float32)

    # ---- float32 path ----
    out = jax.block_until_ready(drop_path(x, u, drop_prob, training=True))
    rand = jnp.floor(keep_prob + u).reshape(B, 1, 1)
    ref = x / keep_prob * rand
    assert jnp.allclose(out, ref, atol=1e-6), "f32 mismatch vs reference"

    # ---- bf16 path (narrow dtype output, f32 scale math in-kernel) ----
    x16 = x.astype(jnp.bfloat16)
    out16 = jax.block_until_ready(drop_path(x16, u, drop_prob, training=True))
    ref16 = (x16.astype(jnp.float32) / keep_prob) * rand
    assert jnp.allclose(out16.astype(jnp.float32), ref16, rtol=2e-2, atol=2e-2), \
        "bf16 mismatch vs reference"

    # ---- non-128-multiple trailing size (exercises ragged last j-tile) ----
    Br, Nr, Dr = 16, 8, 40      # C = 320 -> Ct = 256 + ragged 64-lane tail
    xr = jax.random.normal(kx2, (Br, Nr, Dr), dtype=jnp.float32)
    ur = jax.random.uniform(ku2, (Br,), dtype=jnp.float32)
    outr = jax.block_until_ready(drop_path(xr, ur, drop_prob, training=True))
    refr = xr / keep_prob * jnp.floor(keep_prob + ur).reshape(Br, 1, 1)
    assert jnp.allclose(outr, refr, atol=1e-6), "ragged-C mismatch vs reference"

    # ---- eval / drop_prob==0 / drop_prob==1 paths ----
    assert jnp.allclose(drop_path(x, u, drop_prob, training=False), x)
    assert jnp.allclose(drop_path(x, u, 0.0, training=True), x)
    assert jnp.allclose(drop_path(x, u, 1.0, training=True), jnp.zeros_like(x))

    print("KERNEL_OK")
</pallas_src>

<mosaic_0001>
module attributes {stable_mosaic.version = 11 : i64} {
  func.func @_drop_path_kernel(%arg0: i32, %arg1: i32, %arg2: memref<2x1xf32, #tpu.memory_space<vmem>>, %arg3: memref<2x256xf32, #tpu.memory_space<vmem>>, %arg4: memref<2x256xf32, #tpu.memory_space<vmem>>) attributes {dimension_semantics = [#tpu.dimension_semantics<parallel>, #tpu.dimension_semantics<parallel>], iteration_bounds = array<i64: 1, 1>, scalar_prefetch = 0 : i64, scratch_operands = 0 : i64, tpu.core_type = #tpu.core_type<tc>, window_params = [{transform_indices = @transform_0, window_bounds = array<i64: 2, 1>}, {transform_indices = @transform_1, window_bounds = array<i64: 2, 256>}, {transform_indices = @transform_2, window_bounds = array<i64: 2, 256>}]} {
    %c0 = arith.constant 0 : index
    %c0_0 = arith.constant 0 : index
    %0 = vector.load %arg2[%c0, %c0_0] : memref<2x1xf32, #tpu.memory_space<vmem>>, vector<2x1xf32>
    %cst = arith.constant 0.699999988 : f32
    %1 = vector.broadcast %cst : f32 to vector<2x1xf32>
    %2 = arith.addf %1, %0 : vector<2x1xf32>
    %3 = math.floor %2 : vector<2x1xf32>
    %cst_1 = arith.constant 1.42857146 : f32
    %4 = vector.broadcast %cst_1 : f32 to vector<2x1xf32>
    %5 = arith.mulf %3, %4 : vector<2x1xf32>
    %c0_2 = arith.constant 0 : index
    %c0_3 = arith.constant 0 : index
    %6 = vector.load %arg3[%c0_2, %c0_3] : memref<2x256xf32, #tpu.memory_space<vmem>>, vector<2x256xf32>
    %7 = vector.broadcast %5 : vector<2x1xf32> to vector<2x256xf32>
    %8 = arith.mulf %6, %7 : vector<2x256xf32>
    %c0_4 = arith.constant 0 : index
    %c0_5 = arith.constant 0 : index
    %9 = vector.load %arg4[%c0_4, %c0_5] : memref<2x256xf32, #tpu.memory_space<vmem>>, vector<2x256xf32>
    tpu.vector_store %arg4[%c0_4, %c0_5], %8 {strides = array<i32>} : memref<2x256xf32, #tpu.memory_space<vmem>>, vector<2x256xf32>,
    return
  }
  func.func @transform_0(%arg0: i32, %arg1: i32) -> (i32, i32) {
    %c0_i32 = arith.constant 0 : i32
    %c0_i32_0 = arith.constant 0 : i32
    return %arg0, %c0_i32 : i32, i32
  }
  func.func @transform_1(%arg0: i32, %arg1: i32) -> (i32, i32) {
    %c0_i32 = arith.constant 0 : i32
    return %arg0, %arg1 : i32, i32
  }
  func.func @transform_2(%arg0: i32, %arg1: i32) -> (i32, i32) {
    %c0_i32 = arith.constant 0 : i32
    return %arg0, %arg1 : i32, i32
  }
}

</mosaic_0001>

<llo_original>
// kernel: tpu_custom_call.1
$region0: #{tpu_custom_call.1}
  #allocation0 [shape = 'u32[]', space=smem, size = 0x4, offset = 0x4, fixed_abs, tag = 'smem constant byte address 0x4 - core index']
  #allocation1 [shape = 'u32[72,128]{1,0:T(1,128)}', space=vmem, size = 0x9000, scoped, tag = 'internal scratch']
  %s0 = inlined_call_operand.vmem [shape: f32[2,1], index: 0, kind: input, shape index: {}]
  %s1 = inlined_call_operand.hbm [shape: f32[2,256], index: 1, kind: input, shape index: {}, may-alias: {1,2}]
  %s2 = inlined_call_operand.hbm [shape: f32[2,256], index: 2, kind: output, shape index: {}, may-alias: {1,2}]
  %s3 = sld [smem:[#allocation0]]
  $region22: #{tpu_custom_call.1} parent=0
    _
  %s5 = ssub.s32 1, %s3
  %s6 = scalar_select 0, %s5, %s3
  $region1: #{tpu_custom_call.1} parent=0
    #allocation2 [shape = 'u8[2048]{0}', space=vmem, size = 0x800, scoped, tag = 'input window, operand 1, single buffered']
    #allocation3 [shape = 's32[1]{0}', space=sflag, size = 0x4, scoped, tag = 'scoped memory for tpu_custom_call.1']
    #allocation4 [shape = 's32[1]{0}', space=sflag, size = 0x4, scoped, tag = 'scoped memory for tpu_custom_call.1']
    #allocation5 [shape = 'u8[2048]{0}', space=vmem, size = 0x800, scoped, tag = 'output window, operand 0, single buffered']
    %7 = vsyncpa [#allocation3], 0
    %8 = vsyncpa [#allocation4], 0
    // Predicated region
    $region2: #{tpu_custom_call.1} parent=1 // pred_check
      _
    $region3: #{tpu_custom_call.1} parent=1 // pred_check_branch
      %10 = sbr.rel (0) target = $region5
    $region4: #{tpu_custom_call.1} parent=1 // pred_region
      _
    $region5: #{tpu_custom_call.1} parent=1 // pred_fallthru
      _
    // Predicated region
    $region6: #{tpu_custom_call.1} parent=1 // pred_check
      _
    $region7: #{tpu_custom_call.1} parent=1 // pred_check_branch
      %12 = sbr.rel (0) target = $region9
    $region8: #{tpu_custom_call.1} parent=1 // pred_region
      %14 = vsyncadd [#allocation3], 0
      %s16 = sshll.u32 %s1, 4
      %s17 = int_to_ptr.hbm [resolvable:$true] %s16
      %s18 = sshll.u32 [#allocation2], 4
      %s19 = int_to_ptr.vmem [resolvable:$true] %s18
      %21 = dma.hbm_to_vmem [thread:$0]  %s17, 64, %s19, [#allocation3]
    $region9: #{tpu_custom_call.1} parent=1 // pred_fallthru
      _
    // Predicated region
    $region10: #{tpu_custom_call.1} parent=1 // pred_check
      _
    $region11: #{tpu_custom_call.1} parent=1 // pred_check_branch
      %23 = sbr.rel (0) target = $region13
    $region12: #{tpu_custom_call.1} parent=1 // pred_region
      %25 = dma.done [#allocation3], 64
    $region13: #{tpu_custom_call.1} parent=1 // pred_fallthru
      _
    %v26 = vld [vmem:[%s0] sm:$0x3]
    %v27 = vadd.f32 %v26, 0.7
    %v28 = vfloor.f32 %v27
    %v29 = vmul.f32 %v28, 1.4285715
    %v30 = vld [vmem:[#allocation2] sm:$0xf]
    %32 = vset.pattern.permute.xlu0 0
    %33 = vperm.xlu0 %32, %v29
    %v34 = vpop.permute.xlu0 %33
    %v36 = vunpack.c.l.s4 269488144
    %v37 = vunpack.c.0.s8 %v36
    %v38 = vperm.slane %v34, %v37
    %v40 = vmul.f32 %v30, %v38
    %41 = vst [vmem:[#allocation5] sm:$0xf] %v40
    // Predicated region
    $region14: #{tpu_custom_call.1} parent=1 // pred_check
      _
    $region15: #{tpu_custom_call.1} parent=1 // pred_check_branch
      %43 = sbr.rel (0) target = $region17
    $region16: #{tpu_custom_call.1} parent=1 // pred_region
      %45 = vsyncadd [#allocation4], 0
      %s47 = sshll.u32 [#allocation5], 4
      %s48 = int_to_ptr.vmem [resolvable:$true] %s47
      %s49 = sshll.u32 %s2, 4
      %s50 = int_to_ptr.hbm [resolvable:$true] %s49
      %52 = dma.vmem_to_hbm [thread:$0]  %s48, 64, %s50, [#allocation4]
    $region17: #{tpu_custom_call.1} parent=1 // pred_fallthru
      _
    // Predicated region
    $region18: #{tpu_custom_call.1} parent=1 // pred_check
      _
    $region19: #{tpu_custom_call.1} parent=1 // pred_check_branch
      %54 = sbr.rel (0) target = $region21
    $region20: #{tpu_custom_call.1} parent=1 // pred_region
      %56 = dma.done [#allocation4], 64
    $region21: #{tpu_custom_call.1} parent=1 // pred_fallthru
      _
    %57 = vsyncpa [#allocation3], 1
    %58 = vsyncpa [#allocation4], 1

</llo_original>
